<compile_context>
chip_gen: v6e
topology: v6e:2x2x1
jax: 0.10.0
libtpu: 0.0.40
codegen_flags: <defaults>
</compile_context>

<pallas_src>
import jax
import jax.numpy as jnp
from jax.experimental import pallas as pl
from jax.experimental.pallas import tpu as pltpu

_LANES = 128
_SUBLANES = 8


def _ceil_to(x, m):
    return ((x + m - 1) // m) * m


def _wmae_kernel(pred_ref, targ_ref, w_ref, out_ref):
    """Grid = (partitions, row-blocks). Axis 1 is the reduction axis.

    out_ref is a per-partition (8, W) partial-sum slab that stays resident in
    VMEM across the reduction axis (its block index only depends on axis 0).
    """
    i = pl.program_id(1)

    @pl.when(i == 0)
    def _():
        out_ref[...] = jnp.zeros_like(out_ref)

    p = pred_ref[...].astype(jnp.float32)
    t = targ_ref[...].astype(jnp.float32)
    w = w_ref[...].astype(jnp.float32)              # (1, W) -> broadcasts over rows
    werr = jnp.abs(p - t) * w                       # (tm, W)
    tm, width = werr.shape
    # VPU-only accumulation: fold 8-sublane slabs of the tile into the resident
    # (8, W) accumulator.  The single cross-lane/sublane reduce is deferred to
    # the (tiny) wrapper-side sum of the output slabs.
    out_ref[...] += jnp.sum(werr.reshape(tm // _SUBLANES, _SUBLANES, width), axis=0)


def weighted_mae_loss(predicted, target, weights, *, tm=1024, num_partitions=2):
    """predicted, target: (..., D); weights: (D,).  Returns scalar f32 loss
    = mean(|predicted - target| * weights) — same semantics as the PyTorch module."""
    if weights.shape[0] != target.shape[-1]:
        raise ValueError("weights length must match the last dim of target")
    if predicted.shape != target.shape:
        raise ValueError("predicted and target must have the same shape")

    D = target.shape[-1]
    total = int(predicted.size)                      # true denominator for the mean
    itemsize = jnp.dtype(predicted.dtype).itemsize

    # ---- Layout: lane-densify when the feature dim divides 128. -------------
    if _LANES % D == 0:
        fold = _LANES // D
        width = _LANES
        pred_flat = predicted.reshape(-1)
        targ_flat = target.reshape(-1)
        flat_pad = _ceil_to(total, width) - total
        if flat_pad:
            pred_flat = jnp.pad(pred_flat, (0, flat_pad))
            targ_flat = jnp.pad(targ_flat, (0, flat_pad))
        pred2d = pred_flat.reshape(-1, width)
        targ2d = targ_flat.reshape(-1, width)
        # lane l holds feature (l % D), so the weight row repeats every D lanes
        w_row = jnp.tile(weights, fold).reshape(1, width)
    else:
        # General case (D > 128 or 128 % D != 0): keep full feature dim on lanes.
        width = D
        pred2d = predicted.reshape(-1, D)
        targ2d = target.reshape(-1, D)
        w_row = weights.reshape(1, D)

    # ---- Row tiling: biggest block that fits a conservative VMEM budget -----
    # (2 inputs x 2 pipeline buffers must stay well under the scoped VMEM limit
    # on every generation, including v7x's smaller VMEM).
    rows = pred2d.shape[0]
    vmem_budget = 8 * 1024 * 1024
    max_rows = max(_SUBLANES,
                   (vmem_budget // (4 * width * itemsize)) // _SUBLANES * _SUBLANES)
    tm_eff = min(_ceil_to(tm, _SUBLANES), _ceil_to(rows, _SUBLANES), max_rows)
    tm_eff = max(tm_eff, _SUBLANES)

    rows_pad = _ceil_to(rows, tm_eff * num_partitions)
    if rows_pad != rows:
        pred2d = jnp.pad(pred2d, ((0, rows_pad - rows), (0, 0)))
        targ2d = jnp.pad(targ2d, ((0, rows_pad - rows), (0, 0)))
    blocks_per_part = rows_pad // (tm_eff * num_partitions)

    out = pl.pallas_call(
        _wmae_kernel,
        out_shape=jax.ShapeDtypeStruct((num_partitions * _SUBLANES, width),
                                       jnp.float32),
        grid_spec=pltpu.PrefetchScalarGridSpec(
            num_scalar_prefetch=0,
            grid=(num_partitions, blocks_per_part),
            in_specs=[
                pl.BlockSpec((tm_eff, width),
                             lambda p, i: (p * blocks_per_part + i, 0)),
                pl.BlockSpec((tm_eff, width),
                             lambda p, i: (p * blocks_per_part + i, 0)),
                pl.BlockSpec((1, width), lambda p, i: (0, 0)),   # weights resident
            ],
            out_specs=pl.BlockSpec((_SUBLANES, width), lambda p, i: (p, 0)),
        ),
        compiler_params=pltpu.CompilerParams(
            # axis 0: rows split across TensorCores (v7x); axis 1: reduction.
            dimension_semantics=("parallel", "arbitrary"),
        ),
        cost_estimate=pl.CostEstimate(
            flops=3 * total,
            transcendentals=0,
            bytes_accessed=2 * total * itemsize
            + num_partitions * _SUBLANES * width * 4,
        ),
    )(pred2d, targ2d, w_row)

    # Tiny epilogue in XLA: sum the per-partition partial-sum slabs and divide
    # by the TRUE element count (padding contributed exactly 0).
    return jnp.sum(out) / jnp.float32(total)


if __name__ == "__main__":
    key = jax.random.PRNGKey(0)
    k1, k2, k3 = jax.random.split(key, 3)

    # Small shapes consistent with the module: batch=2, seq=8, hidden=32.
    B, S, D = 2, 8, 32
    predicted = jax.random.normal(k1, (B, S, D), dtype=jnp.float32)
    target = jax.random.normal(k2, (B, S, D), dtype=jnp.float32)
    # Deterministic synthetic per-feature weights (the module's __init__ just stores them).
    weights = jax.random.uniform(k3, (D,), dtype=jnp.float32) + 0.5

    loss = weighted_mae_loss(predicted, target, weights)
    jax.block_until_ready(loss)

    # Reference check in plain JAX (same semantics as the PyTorch module).
    ref = jnp.mean(jnp.abs(predicted - target) * weights.reshape(1, 1, D))
    assert jnp.allclose(loss, ref, rtol=1e-5, atol=1e-6), (loss, ref)

    # Extra check: element count not a multiple of 128 exercises the padding path.
    k4, k5 = jax.random.split(k3)
    p2 = jax.random.normal(k4, (3, 5, D), dtype=jnp.float32)
    t2 = jax.random.normal(k5, (3, 5, D), dtype=jnp.float32)
    loss2 = weighted_mae_loss(p2, t2, weights)
    jax.block_until_ready(loss2)
    ref2 = jnp.mean(jnp.abs(p2 - t2) * weights.reshape(1, 1, D))
    assert jnp.allclose(loss2, ref2, rtol=1e-5, atol=1e-6), (loss2, ref2)

    print("KERNEL_OK")
</pallas_src>

<mosaic_0001>
module attributes {stable_mosaic.version = 11 : i64} {
  func.func @_wmae_kernel(%arg0: i32, %arg1: i32, %arg2: memref<8x128xf32, #tpu.memory_space<vmem>>, %arg3: memref<8x128xf32, #tpu.memory_space<vmem>>, %arg4: memref<1x128xf32, #tpu.memory_space<vmem>>, %arg5: memref<8x128xf32, #tpu.memory_space<vmem>>) attributes {dimension_semantics = [#tpu.dimension_semantics<parallel>, #tpu.dimension_semantics<arbitrary>], iteration_bounds = array<i64: 2, 1>, scalar_prefetch = 0 : i64, scratch_operands = 0 : i64, tpu.core_type = #tpu.core_type<tc>, window_params = [{transform_indices = @transform_0, window_bounds = array<i64: 8, 128>}, {transform_indices = @transform_1, window_bounds = array<i64: 8, 128>}, {pipeline_mode = #tpu.pipeline_mode<synchronous>, transform_indices = @transform_2, window_bounds = array<i64: 1, 128>}, {transform_indices = @transform_3, window_bounds = array<i64: 8, 128>}]} {
    %c0_i32 = arith.constant 0 : i32
    %0 = arith.cmpi eq, %arg1, %c0_i32 : i32
    %1 = arith.extui %0 : i1 to i32
    %c0_i32_0 = arith.constant 0 : i32
    %2 = arith.cmpi ne, %1, %c0_i32_0 : i32
    scf.if %2 {
      %cst_10 = arith.constant 0.000000e+00 : f32
      %15 = vector.broadcast %cst_10 : f32 to vector<8x128xf32>
      %c0_11 = arith.constant 0 : index
      %c0_12 = arith.constant 0 : index
      %16 = vector.load %arg5[%c0_11, %c0_12] : memref<8x128xf32, #tpu.memory_space<vmem>>, vector<8x128xf32>
      tpu.vector_store %arg5[%c0_11, %c0_12], %15 {strides = array<i32>} : memref<8x128xf32, #tpu.memory_space<vmem>>, vector<8x128xf32>,
    } else {
    }
    %c0 = arith.constant 0 : index
    %c0_1 = arith.constant 0 : index
    %3 = vector.load %arg2[%c0, %c0_1] : memref<8x128xf32, #tpu.memory_space<vmem>>, vector<8x128xf32>
    %c0_2 = arith.constant 0 : index
    %c0_3 = arith.constant 0 : index
    %4 = vector.load %arg3[%c0_2, %c0_3] : memref<8x128xf32, #tpu.memory_space<vmem>>, vector<8x128xf32>
    %c0_4 = arith.constant 0 : index
    %c0_5 = arith.constant 0 : index
    %5 = vector.load %arg4[%c0_4, %c0_5] : memref<1x128xf32, #tpu.memory_space<vmem>>, vector<1x128xf32>
    %6 = arith.subf %3, %4 : vector<8x128xf32>
    %7 = math.absf %6 : vector<8x128xf32>
    %8 = vector.broadcast %5 : vector<1x128xf32> to vector<8x128xf32>
    %9 = arith.mulf %7, %8 : vector<8x128xf32>
    %c0_6 = arith.constant 0 : index
    %c0_7 = arith.constant 0 : index
    %10 = vector.load %arg5[%c0_6, %c0_7] : memref<8x128xf32, #tpu.memory_space<vmem>>, vector<8x128xf32>
    %11 = vector.shape_cast %9 : vector<8x128xf32> to vector<1x8x128xf32>
    %cst = arith.constant dense<0.000000e+00> : vector<8x128xf32>
    %12 = vector.multi_reduction <add>, %11, %cst [0] : vector<1x8x128xf32> to vector<8x128xf32>
    %13 = arith.addf %10, %12 : vector<8x128xf32>
    %c0_8 = arith.constant 0 : index
    %c0_9 = arith.constant 0 : index
    %14 = vector.load %arg5[%c0_8, %c0_9] : memref<8x128xf32, #tpu.memory_space<vmem>>, vector<8x128xf32>
    tpu.vector_store %arg5[%c0_8, %c0_9], %13 {strides = array<i32>} : memref<8x128xf32, #tpu.memory_space<vmem>>, vector<8x128xf32>,
    return
  }
  func.func @transform_0(%arg0: i32, %arg1: i32) -> (i32, i32) {
    %c1_i32 = arith.constant 1 : i32
    %0 = arith.muli %arg0, %c1_i32 : i32
    %1 = arith.addi %0, %arg1 : i32
    %c0_i32 = arith.constant 0 : i32
    %c0_i32_0 = arith.constant 0 : i32
    return %1, %c0_i32 : i32, i32
  }
  func.func @transform_1(%arg0: i32, %arg1: i32) -> (i32, i32) {
    %c1_i32 = arith.constant 1 : i32
    %0 = arith.muli %arg0, %c1_i32 : i32
    %1 = arith.addi %0, %arg1 : i32
    %c0_i32 = arith.constant 0 : i32
    %c0_i32_0 = arith.constant 0 : i32
    return %1, %c0_i32 : i32, i32
  }
  func.func @transform_2(%arg0: i32, %arg1: i32) -> (i32, i32) {
    %c0_i32 = arith.constant 0 : i32
    %c0_i32_0 = arith.constant 0 : i32
    %c0_i32_1 = arith.constant 0 : i32
    return %c0_i32, %c0_i32_0 : i32, i32
  }
  func.func @transform_3(%arg0: i32, %arg1: i32) -> (i32, i32) {
    %c0_i32 = arith.constant 0 : i32
    %c0_i32_0 = arith.constant 0 : i32
    return %arg0, %c0_i32 : i32, i32
  }
}

</mosaic_0001>

<llo_original>
// kernel: tpu_custom_call.1
$region0: #{tpu_custom_call.1}
  #allocation0 [shape = 'u32[]', space=smem, size = 0x4, offset = 0x4, fixed_abs, tag = 'smem constant byte address 0x4 - core index']
  #allocation1 [shape = 'u32[144,128]{1,0:T(1,128)}', space=vmem, size = 0x12000, scoped, tag = 'internal scratch']
  %s0 = inlined_call_operand.hbm [shape: f32[16,128], index: 0, kind: input, shape index: {}]
  %s1 = inlined_call_operand.hbm [shape: f32[16,128], index: 1, kind: input, shape index: {}]
  %s2 = inlined_call_operand.vmem [shape: f32[1,128], index: 2, kind: input, shape index: {}]
  %s3 = inlined_call_operand.hbm [shape: f32[16,128], index: 3, kind: output, shape index: {}]
  %s4 = sld [smem:[#allocation0]]
  $region57: #{tpu_custom_call.1} parent=0
    _
  %s6 = ssub.s32 1, %s4
  %s7 = scalar_select 0, %s6, %s4
  $region1: #{tpu_custom_call.1} parent=0
    #allocation2 [shape = 'u8[8192]{0}', space=vmem, size = 0x2000, scoped, tag = 'input window, operand 0']
    #allocation3 [shape = 's32[2]{0}', space=sflag, size = 0x8, scoped, tag = 'scoped memory for tpu_custom_call.1']
    #allocation4 [shape = 's32[2]{0}', space=sflag, size = 0x8, scoped, tag = 'scoped memory for tpu_custom_call.1']
    #allocation5 [shape = 'u8[8192]{0}', space=vmem, size = 0x2000, scoped, tag = 'input window, operand 1']
    #allocation6 [shape = 's32[2]{0}', space=sflag, size = 0x8, scoped, tag = 'scoped memory for tpu_custom_call.1']
    #allocation7 [shape = 'u8[8192]{0}', space=vmem, size = 0x2000, scoped, tag = 'output window, operand 0']
    %8 = vsyncpa [#allocation3], 0
    %s9 = scalar_lea.sflag [#allocation3], 1
    %10 = vsyncpa %s9, 0
    %11 = vsyncpa [#allocation6], 0
    %s12 = scalar_lea.sflag [#allocation6], 1
    %13 = vsyncpa %s12, 0
    %14 = vsyncpa [#allocation4], 0
    %s15 = scalar_lea.sflag [#allocation4], 1
    %16 = vsyncpa %s15, 0
    loop: start=0, step=1, limit=4
    $region2: #{tpu_custom_call.1} parent=1 // loop_pre_header
      _
    $region3: #{tpu_custom_call.1} parent=1 // loop_header
      %s18 = sphi 0, %s22
      %p19 = scmp.ge.s32.totalorder %s18, 4
      %s25 = sphi 0, %s37
      %s26 = sphi 0, %s33
      %s27 = sphi 0, %s25
      %s28 = sphi 0, %s26
      %s29 = sphi 0, %s27
      %s30 = sphi 0, %s28
      %s42 = sphi 0, %s44
      %s45 = sphi 0, %s42
      %s46 = sphi 0, %s45
      %s62 = sphi 0, %s46
      %s70 = sphi 0, %s72
      %s73 = sphi 0, %s70
      %s74 = sphi 0, %s73
      %s90 = sphi 0, %s74
      %s94 = sphi 0, %s94
      %s96 = sphi 0, %s94
      %s97 = sphi 0, %s96
      %s111 = sphi 0, %s97
      %s117 = sphi 0, %s119
      %s120 = sphi 0, %s117
      %s121 = sphi 0, %s120
      %s137 = sphi 0, %s121
    $region4: #{tpu_custom_call.1} parent=1 // loop_header_branch
      %21 = sbr.rel (%p19) target = $region8
    $region5: #{tpu_custom_call.1} parent=1 // loop_body
      %s23 = ssub.s32 %s18, 1
      %s24 = ssub.s32 %s18, 2
      %s31 = sadd.s32 1, %s26
      %p32 = scmp.ge.s32.totalorder %s31, 1
      %s33 = scalar_select %p32, 0, %s31
      %s34 = sadd.s32 1, %s25
      %s35 = scalar_select %p32, %s34, %s25
      %p36 = scmp.ge.s32.totalorder %s35, 2
      %s37 = scalar_select %p36, 0, %s35
      %s38 = sadd.s32 %s25, %s26
      %s39 = sadd.s32 %s37, %s33
      %s40 = ssub.s32 %s38, %s39
      %p41 = scmp.eq.s32.totalorder %s40, 0
      %s43 = sadd.s32 %s42, 1
      %s44 = scalar_select %p41, %s42, %s43
      %p47 = pneg %p41
      %p48 = scmp.eq.s32.totalorder %s18, 1
      %p49 = por %p47, %p48
      %p50 = scmp.ne.s32.totalorder %s42, %s45
      %p51 = scmp.eq.s32.totalorder %s18, 0
      %p52 = por %p50, %p51
      %p53 = scmp.ne.s32.totalorder %s42, %s45
      %p54 = scmp.eq.s32.totalorder %s23, 1
      %p55 = por %p53, %p54
      %p56 = scmp.ne.s32.totalorder %s45, %s46
      %p57 = scmp.eq.s32.totalorder %s23, 0
      %p58 = por %p56, %p57
      %p59 = scmp.ne.s32.totalorder %s45, %s46
      %p60 = scmp.eq.s32.totalorder %s24, 1
      %p61 = por %p59, %p60
      %p63 = scmp.ne.s32.totalorder %s46, %s62
      %p64 = scmp.eq.s32.totalorder %s24, 0
      %p65 = por %p63, %p64
      %s66 = sadd.s32 %s25, %s26
      %s67 = sadd.s32 %s37, %s33
      %s68 = ssub.s32 %s66, %s67
      %p69 = scmp.eq.s32.totalorder %s68, 0
      %s71 = sadd.s32 %s70, 1
      %s72 = scalar_select %p69, %s70, %s71
      %p75 = pneg %p69
      %p76 = scmp.eq.s32.totalorder %s18, 1
      %p77 = por %p75, %p76
      %p78 = scmp.ne.s32.totalorder %s70, %s73
      %p79 = scmp.eq.s32.totalorder %s18, 0
      %p80 = por %p78, %p79
      %p81 = scmp.ne.s32.totalorder %s70, %s73
      %p82 = scmp.eq.s32.totalorder %s23, 1
      %p83 = por %p81, %p82
      %p84 = scmp.ne.s32.totalorder %s73, %s74
      %p85 = scmp.eq.s32.totalorder %s23, 0
      %p86 = por %p84, %p85
      %p87 = scmp.ne.s32.totalorder %s73, %s74
      %p88 = scmp.eq.s32.totalorder %s24, 1
      %p89 = por %p87, %p88
      %p91 = scmp.ne.s32.totalorder %s74, %s90
      %p92 = scmp.eq.s32.totalorder %s24, 0
      %p93 = por %p91, %p92
      %s95 = sadd.s32 %s94, 1
      %p98 = scmp.eq.s32.totalorder %s18, 1
      %p99 = scmp.ne.s32.totalorder %s94, %s96
      %p100 = scmp.eq.s32.totalorder %s18, 0
      %p101 = por %p99, %p100
      %p102 = scmp.ne.s32.totalorder %s94, %s96
      %p103 = scmp.eq.s32.totalorder %s23, 1
      %p104 = por %p102, %p103
      %p105 = scmp.ne.s32.totalorder %s96, %s97
      %p106 = scmp.eq.s32.totalorder %s23, 0
      %p107 = por %p105, %p106
      %p108 = scmp.ne.s32.totalorder %s96, %s97
      %p109 = scmp.eq.s32.totalorder %s24, 1
      %p110 = por %p108, %p109
      %p112 = scmp.ne.s32.totalorder %s97, %s111
      %p113 = scmp.eq.s32.totalorder %s24, 0
      %p114 = por %p112, %p113
      %s115 = ssub.s32 %s25, %s37
      %p116 = scmp.eq.s32.totalorder %s115, 0
      %s118 = sadd.s32 %s117, 1
      %s119 = scalar_select %p116, %s117, %s118
      %p122 = pneg %p116
      %p123 = scmp.eq.s32.totalorder %s18, 1
      %p124 = por %p122, %p123
      %p125 = scmp.ne.s32.totalorder %s117, %s120
      %p126 = scmp.eq.s32.totalorder %s18, 0
      %p127 = por %p125, %p126
      %p128 = scmp.ne.s32.totalorder %s117, %s120
      %p129 = scmp.eq.s32.totalorder %s23, 1
      %p130 = por %p128, %p129
      %p131 = scmp.ne.s32.totalorder %s120, %s121
      %p132 = scmp.eq.s32.totalorder %s23, 0
      %p133 = por %p131, %p132
      %p134 = scmp.ne.s32.totalorder %s120, %s121
      %p135 = scmp.eq.s32.totalorder %s24, 1
      %p136 = por %p134, %p135
      %p138 = scmp.ne.s32.totalorder %s121, %s137
      %p139 = scmp.eq.s32.totalorder %s24, 0
      %p140 = por %p138, %p139
      %p141 = scmp.le.s32.totalorder 1, %s18
      %p142 = scmp.lt.s32.totalorder %s18, 3
      %p143 = pnand %p141, %p142
      %p144 = pneg %p143
      // Predicated region
      $region9: #{tpu_custom_call.1} parent=5 // pred_check
        _
      $region10: #{tpu_custom_call.1} parent=5 // pred_check_branch
        %146 = sbr.rel (%p143) target = $region12
      $region11: #{tpu_custom_call.1} parent=5 // pred_region
        %s147 = ssub.s32 %s18, 1
        // Predicated region
        $region13: #{tpu_custom_call.1} parent=11 // pred_check
          %p148 = pneg %p107
        $region14: #{tpu_custom_call.1} parent=11 // pred_check_branch
          %150 = sbr.rel (%p148) target = $region16
        $region15: #{tpu_custom_call.1} parent=11 // pred_region
          _
        $region16: #{tpu_custom_call.1} parent=11 // pred_fallthru
          _
      $region12: #{tpu_custom_call.1} parent=5 // pred_fallthru
        _
      %p151 = scmp.lt.s32.totalorder %s18, 2
      // Predicated region
      $region17: #{tpu_custom_call.1} parent=5 // pred_check
        %p152 = pneg %p151
      $region18: #{tpu_custom_call.1} parent=5 // pred_check_branch
        %154 = sbr.rel (%p152) target = $region20
      $region19: #{tpu_custom_call.1} parent=5 // pred_region
        // Predicated region
        $region21: #{tpu_custom_call.1} parent=19 // pred_check
          %p155 = pneg %p52
        $region22: #{tpu_custom_call.1} parent=19 // pred_check_branch
          %157 = sbr.rel (%p155) target = $region24
        $region23: #{tpu_custom_call.1} parent=19 // pred_region
          %s158 = sand.u32 %s42, 1
          %s159 = scalar_lea.sflag [#allocation3], %s158
          %s160 = sand.u32 %s42, 1
          %s161 = smul.addr %s160, 8
          %s162 = scalar_lea.vmem [#allocation2], %s161
          %s163 = sadd.s32 %s25, %s26
          %s165 = ssub.s32 128, 128
          %166 = vsyncadd %s159, %s165
          %s167 = smul.addr %s163, 128
          %s168 = scalar_lea.hbm %s0, %s167
          %s170 = sshll.u32 %s162, 4
          %s171 = int_to_ptr.vmem [resolvable:$true] %s170
          %173 = dma.hbm_to_vmem [thread:$0]  %s168, 128, %s171, %s159
        $region24: #{tpu_custom_call.1} parent=19 // pred_fallthru
          _
        // Predicated region
        $region25: #{tpu_custom_call.1} parent=19 // pred_check
          %p174 = pneg %p80
        $region26: #{tpu_custom_call.1} parent=19 // pred_check_branch
          %176 = sbr.rel (%p174) target = $region28
        $region27: #{tpu_custom_call.1} parent=19 // pred_region
          %s177 = sand.u32 %s70, 1
          %s178 = scalar_lea.sflag [#allocation6], %s177
          %s179 = sand.u32 %s70, 1
          %s180 = smul.addr %s179, 8
          %s181 = scalar_lea.vmem [#allocation5], %s180
          %s182 = sadd.s32 %s25, %s26
          %s184 = ssub.s32 128, 128
          %185 = vsyncadd %s178, %s184
          %s186 = smul.addr %s182, 128
          %s187 = scalar_lea.hbm %s1, %s186
          %s189 = sshll.u32 %s181, 4
          %s190 = int_to_ptr.vmem [resolvable:$true] %s189
          %192 = dma.hbm_to_vmem [thread:$0]  %s187, 128, %s190, %s178
        $region28: #{tpu_custom_call.1} parent=19 // pred_fallthru
          _
      $region20: #{tpu_custom_call.1} parent=5 // pred_fallthru
        _
      %p193 = scmp.le.s32.totalorder 1, %s18
      %p194 = scmp.lt.s32.totalorder %s18, 3
      %p195 = pnand %p193, %p194
      %p196 = pneg %p195
      // Predicated region
      $region29: #{tpu_custom_call.1} parent=5 // pred_check
        _
      $region30: #{tpu_custom_call.1} parent=5 // pred_check_branch
        %198 = sbr.rel (%p195) target = $region32
      $region31: #{tpu_custom_call.1} parent=5 // pred_region
        %s199 = ssub.s32 %s18, 1
        %s200 = sand.u32 %s45, 1
        %s201 = scalar_lea.sflag [#allocation3], %s200
        %s202 = sand.u32 %s45, 1
        %s203 = smul.addr %s202, 8
        %s204 = scalar_lea.vmem [#allocation2], %s203
        // Predicated region
        $region33: #{tpu_custom_call.1} parent=31 // pred_check
          %p205 = pneg %p58
        $region34: #{tpu_custom_call.1} parent=31 // pred_check_branch
          %207 = sbr.rel (%p205) target = $region36
        $region35: #{tpu_custom_call.1} parent=31 // pred_region
          %208 = dma.done %s201, 128
        $region36: #{tpu_custom_call.1} parent=31 // pred_fallthru
          _
        %s209 = sand.u32 %s73, 1
        %s210 = scalar_lea.sflag [#allocation6], %s209
        %s211 = sand.u32 %s73, 1
        %s212 = smul.addr %s211, 8
        %s213 = scalar_lea.vmem [#allocation5], %s212
        // Predicated region
        $region37: #{tpu_custom_call.1} parent=31 // pred_check
          %p214 = pneg %p86
        $region38: #{tpu_custom_call.1} parent=31 // pred_check_branch
          %216 = sbr.rel (%p214) target = $region40
        $region39: #{tpu_custom_call.1} parent=31 // pred_region
          %217 = dma.done %s210, 128
        $region40: #{tpu_custom_call.1} parent=31 // pred_fallthru
          _
        %s218 = sand.u32 %s45, 1
        %s219 = scalar_lea.sflag [#allocation3], %s218
        %s220 = sand.u32 %s45, 1
        %s221 = smul.addr %s220, 8
        %s222 = scalar_lea.vmem [#allocation2], %s221
        %p223 = pneg %p58
        %p224 = pneg %p55
        %s225 = sand.u32 %s73, 1
        %s226 = scalar_lea.sflag [#allocation6], %s225
        %s227 = sand.u32 %s73, 1
        %s228 = smul.addr %s227, 8
        %s229 = scalar_lea.vmem [#allocation5], %s228
        %p230 = pneg %p86
        %p231 = pneg %p83
        %p232 = pneg %p107
        %p233 = pneg %p104
        %p234 = pneg %p133
        %p235 = pneg %p130
        %s236 = sand.u32 %s120, 1
        %s237 = scalar_lea.sflag [#allocation4], %s236
        %s238 = sand.u32 %s120, 1
        %s239 = smul.addr %s238, 8
        %s240 = scalar_lea.vmem [#allocation7], %s239
        %s241 = sadd.s32 %s27, %s28
        %s242 = sadd.s32 %s27, %s28
        %p243 = scmp.eq.s32.totalorder %s28, 0
        // Predicated region
        $region41: #{tpu_custom_call.1} parent=31 // pred_check
          %p244 = pneg %p243
        $region42: #{tpu_custom_call.1} parent=31 // pred_check_branch
          %246 = sbr.rel (%p244) target = $region44
        $region43: #{tpu_custom_call.1} parent=31 // pred_region
          %247 = vst [vmem:[%s240] sm:$0xff] 0.0
        $region44: #{tpu_custom_call.1} parent=31 // pred_fallthru
          _
        %v248 = vld [vmem:[%s204] sm:$0xff]
        %v249 = vld [vmem:[%s213] sm:$0xff]
        %v250 = vld [vmem:[%s2] sm:$0x1]
        %v251 = vsub.f32 %v248, %v249
        %v252 = vand.u32 2147483647, %v251
        %v254 = vlaneseq
        %v255 = vshrl.u32 %v254, 7
        %v256 = vsub.s32 0, %v255
        %v257 = vrot.slane %v250, %v256
        %v259 = vmul.f32 %v252, %v257
        %v260 = vld [vmem:[%s240] sm:$0xff]
        %v261 = vadd.f32 %v259, 0.0
        %v262 = vadd.f32 %v260, %v261
        %263 = vst [vmem:[%s240] sm:$0xff] %v262
        %s264 = sand.u32 %s120, 1
        %s265 = scalar_lea.sflag [#allocation4], %s264
        %s266 = sand.u32 %s120, 1
        %s267 = smul.addr %s266, 8
        %s268 = scalar_lea.vmem [#allocation7], %s267
        // Predicated region
        $region45: #{tpu_custom_call.1} parent=31 // pred_check
          %p269 = pneg %p130
        $region46: #{tpu_custom_call.1} parent=31 // pred_check_branch
          %271 = sbr.rel (%p269) target = $region48
        $region47: #{tpu_custom_call.1} parent=31 // pred_region
          %s273 = ssub.s32 128, 128
          %274 = vsyncadd %s265, %s273
          %s275 = smul.addr %s27, 128
          %s276 = scalar_lea.hbm %s3, %s275
          %s278 = sshll.u32 %s268, 4
          %s279 = int_to_ptr.vmem [resolvable:$true] %s278
          %281 = dma.vmem_to_hbm [thread:$0]  %s279, 128, %s276, %s265
        $region48: #{tpu_custom_call.1} parent=31 // pred_fallthru
          _
      $region32: #{tpu_custom_call.1} parent=5 // pred_fallthru
        _
      %p282 = scmp.le.s32.totalorder 2, %s18
      // Predicated region
      $region49: #{tpu_custom_call.1} parent=5 // pred_check
        %p283 = pneg %p282
      $region50: #{tpu_custom_call.1} parent=5 // pred_check_branch
        %285 = sbr.rel (%p283) target = $region52
      $region51: #{tpu_custom_call.1} parent=5 // pred_region
        %s286 = ssub.s32 %s18, 2
        // Predicated region
        $region53: #{tpu_custom_call.1} parent=51 // pred_check
          %p287 = pneg %p136
        $region54: #{tpu_custom_call.1} parent=51 // pred_check_branch
          %289 = sbr.rel (%p287) target = $region56
        $region55: #{tpu_custom_call.1} parent=51 // pred_region
          %s290 = sand.u32 %s121, 1
          %s291 = scalar_lea.sflag [#allocation4], %s290
          %s292 = sand.u32 %s121, 1
          %s293 = smul.addr %s292, 8
          %s294 = scalar_lea.vmem [#allocation7], %s293
          %295 = dma.done %s291, 128
        $region56: #{tpu_custom_call.1} parent=51 // pred_fallthru
          _
      $region52: #{tpu_custom_call.1} parent=5 // pred_fallthru
        _
    $region6: #{tpu_custom_call.1} parent=1 // loop_footer
      %s22 = sadd.s32 1, %s18
    $region7: #{tpu_custom_call.1} parent=1 // loop_footer_branch
      %17 = sbr.rel target = $region3
    $region8: #{tpu_custom_call.1} parent=1 // loop_exit
      _
    %296 = vsyncpa [#allocation3], 1
    %s297 = scalar_lea.sflag [#allocation3], 1
    %298 = vsyncpa %s297, 1
    %299 = vsyncpa [#allocation6], 1
    %s300 = scalar_lea.sflag [#allocation6], 1
    %301 = vsyncpa %s300, 1
    %302 = vsyncpa [#allocation4], 1
    %s303 = scalar_lea.sflag [#allocation4], 1
    %304 = vsyncpa %s303, 1

</llo_original>
